<compile_context>
chip_gen: v6e
topology: v6e:2x2x1
jax: 0.10.0
libtpu: 0.0.40
codegen_flags: <defaults>
</compile_context>

<pallas_src>
from functools import partial

import jax
import jax.numpy as jnp
from jax import lax
from jax.experimental import pallas as pl
from jax.experimental.pallas import tpu as pltpu


def _sigmoid(z):
    return 1.0 / (1.0 + jnp.exp(-z))


def _cbam_kernel(x_ref, w1t_ref, w2t_ref, cmat_ref, o_ref):
    # x_ref/o_ref: (bt, C, HW) lane-dense blocks.
    # w1t_ref: (C, Ch) = w1.T | w2t_ref: (Ch, C) = w2.T
    # cmat_ref: (2*HW, HW) folded 7x7 conv (rows [0,HW): avg map, [HW,2HW): max map).
    bt, C, HW = x_ref.shape
    inv_hw = 1.0 / HW
    inv_c = 1.0 / C

    x = x_ref[...]                                            # (bt, C, HW) f32

    # ---- channel attention: global avg/max pool + tiny MLP + sigmoid ----
    avg = jnp.sum(x, axis=2) * inv_hw                         # (bt, C)
    mx = jnp.max(x, axis=2)                                   # (bt, C)

    w1t = w1t_ref[...]                                        # (C, Ch)
    w2t = w2t_ref[...]                                        # (Ch, C)

    def fc(v):                                                # v: (bt, C)
        h = jnp.dot(v, w1t, preferred_element_type=jnp.float32)    # (bt, Ch)
        h = jnp.maximum(h, 0.0)                                     # ReLU
        return jnp.dot(h, w2t, preferred_element_type=jnp.float32)  # (bt, C)

    ca = _sigmoid(fc(avg) + fc(mx))                           # (bt, C)

    # Keep x1 live (only a handful of vregs); do NOT round-trip through o_ref.
    x1 = x * ca[:, :, None]                                   # (bt, C, HW)

    # ---- spatial attention: channel mean/max + folded 7x7 conv (1 matmul) ----
    am = jnp.sum(x1, axis=1) * inv_c                          # (bt, HW)
    mm = jnp.max(x1, axis=1)                                  # (bt, HW)
    stacked = jnp.concatenate([am, mm], axis=1)               # (bt, 2*HW)
    conv = jnp.dot(stacked, cmat_ref[...],
                   preferred_element_type=jnp.float32)        # (bt, HW)
    sa = _sigmoid(conv)                                       # (bt, HW)

    # Single write of the output block.
    o_ref[...] = (x1 * sa[:, None, :]).astype(o_ref.dtype)


def _tpu_config():
    """Returns (n_parallel_cores, default_scoped_vmem_bytes, tile_budget_bytes)."""
    kind = ""
    try:
        kind = jax.devices()[0].device_kind.lower()
    except Exception:
        pass
    if "v5" in kind and ("lite" in kind or "5e" in kind):
        return 1, 16 << 20, 12 << 20          # v5e: 1 TC, 16 MiB default scoped
    if "v6" in kind:
        return 1, 32 << 20, 24 << 20          # v6e: 1 TC, 32 MiB default scoped
    if "v7" in kind or "7x" in kind:
        return 2, 32 << 20, 24 << 20          # v7x: 2 TCs, 64 MiB physical VMEM
    return 2, 16 << 20, 12 << 20              # unknown: be conservative


def _pick_batch_tile(B, C, HW, *, n_cores, budget_bytes, fixed_bytes):
    """Largest bt dividing B such that (a) on multi-TC parts the grid-step
    count stays divisible by the core count (equal work per TensorCore) and
    (b) the double-buffered in+out blocks plus invariant operands fit the
    per-generation VMEM budget.  Single-TC parts may use a single grid step."""
    best = 1
    for bt in range(1, B + 1):
        if B % bt:
            continue
        steps = B // bt
        if n_cores > 1 and B >= n_cores and steps % n_cores != 0:
            continue
        if fixed_bytes + 4 * bt * C * HW * 4 > budget_bytes:
            continue
        best = bt
    return best


@partial(jax.jit, static_argnames=("kernel_size", "batch_tile"))
def cbam_forward(x, w1, w2, w_sp, kernel_size=7, batch_tile=None):
    """x: (B, C, H, W) f32; w1: (Ch, C); w2: (C, Ch); w_sp: (2, K, K)."""
    B, C, H, W = x.shape
    Ch = w1.shape[0]
    K = kernel_size
    P = (K - 1) // 2
    HW = H * W

    n_cores, default_vmem, tile_budget = _tpu_config()

    cmat_bytes = 2 * HW * HW * 4
    weights_bytes = 2 * C * Ch * 4
    fixed_bytes = 2 * cmat_bytes + 2 * weights_bytes + (1 << 20)  # dbl-buffered invariants + slack

    bt = batch_tile if batch_tile is not None else _pick_batch_tile(
        B, C, HW, n_cores=n_cores, budget_bytes=tile_budget, fixed_bytes=fixed_bytes)
    assert B % bt == 0

    # Lane-dense view of contiguous NCHW (free reshape): last dim = H*W lanes.
    xf = x.reshape(B, C, HW)

    # Glue: fold the padded KxK conv into a (2*HW, HW) matrix built from the
    # conv weights only.  Row = flat input pixel of (avg|max) map, col = flat
    # output pixel.
    # TODO(synk): for large H*W this O((H*W)^2) matrix exceeds VMEM; switch to
    # a banded / pltpu.roll formulation instead of the dense fold.
    idx = jnp.arange(HW)
    oi = (idx // W)[None, :]
    oj = (idx % W)[None, :]
    ii = (idx // W)[:, None]
    ij = (idx % W)[:, None]
    dy = ii - oi + P                                          # (HW, HW)
    dx = ij - oj + P
    valid = (dy >= 0) & (dy < K) & (dx >= 0) & (dx < K)
    cmat = jnp.where(valid[None],
                     w_sp[:, jnp.clip(dy, 0, K - 1), jnp.clip(dx, 0, K - 1)],
                     0.0).astype(jnp.float32)                 # (2, HW, HW)
    cmat2 = cmat.reshape(2 * HW, HW)                          # avg rows first

    # VMEM estimate: 2x in + 2x out double buffers + invariant operands.
    block_bytes = bt * C * HW * 4
    est_vmem = 4 * block_bytes + fixed_bytes
    compiler_kwargs = dict(dimension_semantics=("parallel",))
    if est_vmem > default_vmem - (4 << 20):
        # Raise the scoped limit only when needed; cap <= 48 MiB so there is
        # headroom below v7x's 64 MiB physical VMEM.
        compiler_kwargs["vmem_limit_bytes"] = int(min(48 << 20, est_vmem + (8 << 20)))
    compiler_params = pltpu.CompilerParams(**compiler_kwargs)

    out = pl.pallas_call(
        _cbam_kernel,
        out_shape=jax.ShapeDtypeStruct((B, C, HW), x.dtype),
        grid=(B // bt,),
        in_specs=[
            pl.BlockSpec((bt, C, HW), lambda b: (b, 0, 0)),
            pl.BlockSpec((C, Ch), lambda b: (0, 0)),
            pl.BlockSpec((Ch, C), lambda b: (0, 0)),
            pl.BlockSpec((2 * HW, HW), lambda b: (0, 0)),
        ],
        out_specs=pl.BlockSpec((bt, C, HW), lambda b: (b, 0, 0)),
        compiler_params=compiler_params,
    )(xf, jnp.transpose(w1), jnp.transpose(w2), cmat2)

    return out.reshape(B, C, H, W)


def cbam_reference(x, w1, w2, w_sp):
    """Pure-JAX reference replicating the PyTorch module."""
    K = w_sp.shape[-1]
    P = (K - 1) // 2
    avg = jnp.mean(x, axis=(2, 3), keepdims=True)
    mx = jnp.max(x, axis=(2, 3), keepdims=True)

    def fc(v):
        h = jnp.einsum('bcij,oc->boij', v, w1)
        h = jnp.maximum(h, 0.0)
        return jnp.einsum('bcij,oc->boij', h, w2)

    ca = jax.nn.sigmoid(fc(avg) + fc(mx))
    x1 = x * ca

    am = jnp.mean(x1, axis=1, keepdims=True)
    mm = jnp.max(x1, axis=1, keepdims=True)
    cat = jnp.concatenate([am, mm], axis=1)                   # (B, 2, H, W)
    conv = lax.conv_general_dilated(
        cat, w_sp[None], window_strides=(1, 1),
        padding=((P, P), (P, P)),
        dimension_numbers=('NCHW', 'OIHW', 'NCHW'))
    sa = jax.nn.sigmoid(conv)
    return x1 * sa


if __name__ == "__main__":
    B, C, H, W = 2, 32, 16, 16
    reduction_ratio = 16
    Ch = C // reduction_ratio
    K = 7

    key = jax.random.PRNGKey(0)
    kx, k1, k2, k3 = jax.random.split(key, 4)
    x = jax.random.normal(kx, (B, C, H, W), dtype=jnp.float32)
    # Conv2d(C, C//r, 1, bias=False).weight  -> (Ch, C)
    w1 = jax.random.normal(k1, (Ch, C), dtype=jnp.float32) * 0.2
    # Conv2d(C//r, C, 1, bias=False).weight  -> (C, Ch)
    w2 = jax.random.normal(k2, (C, Ch), dtype=jnp.float32) * 0.2
    # Conv2d(2, 1, 7, padding=3, bias=False).weight[0] -> (2, 7, 7)
    w_sp = jax.random.normal(k3, (2, K, K), dtype=jnp.float32) * 0.1

    out = jax.block_until_ready(cbam_forward(x, w1, w2, w_sp, kernel_size=K))
    ref = jax.block_until_ready(cbam_reference(x, w1, w2, w_sp))

    assert out.shape == x.shape and out.dtype == x.dtype
    if not jnp.allclose(out, ref, atol=1e-4, rtol=1e-4):
        max_err = float(jnp.max(jnp.abs(out - ref)))
        raise AssertionError(f"mismatch vs reference, max abs err = {max_err}")
    print("KERNEL_OK")
</pallas_src>

<mosaic_0001>
module attributes {stable_mosaic.version = 11 : i64} {
  func.func @_cbam_kernel(%arg0: i32, %arg1: memref<1x32x256xf32, #tpu.memory_space<vmem>>, %arg2: memref<32x2xf32, #tpu.memory_space<vmem>>, %arg3: memref<2x32xf32, #tpu.memory_space<vmem>>, %arg4: memref<512x256xf32, #tpu.memory_space<vmem>>, %arg5: memref<1x32x256xf32, #tpu.memory_space<vmem>>) attributes {dimension_semantics = [#tpu.dimension_semantics<parallel>], iteration_bounds = array<i64: 2>, scalar_prefetch = 0 : i64, scratch_operands = 0 : i64, tpu.core_type = #tpu.core_type<tc>, window_params = [{transform_indices = @transform_0, window_bounds = array<i64: 1, 32, 256>}, {pipeline_mode = #tpu.pipeline_mode<synchronous>, transform_indices = @transform_1, window_bounds = array<i64: 32, 2>}, {pipeline_mode = #tpu.pipeline_mode<synchronous>, transform_indices = @transform_2, window_bounds = array<i64: 2, 32>}, {pipeline_mode = #tpu.pipeline_mode<synchronous>, transform_indices = @transform_3, window_bounds = array<i64: 512, 256>}, {transform_indices = @transform_4, window_bounds = array<i64: 1, 32, 256>}]} {
    %c0 = arith.constant 0 : index
    %c0_0 = arith.constant 0 : index
    %c0_1 = arith.constant 0 : index
    %0 = vector.load %arg1[%c0, %c0_0, %c0_1] : memref<1x32x256xf32, #tpu.memory_space<vmem>>, vector<1x32x256xf32>
    %cst = arith.constant dense<0.000000e+00> : vector<1x32xf32>
    %1 = vector.multi_reduction <add>, %0, %cst [2] : vector<1x32x256xf32> to vector<1x32xf32>
    %cst_2 = arith.constant 3.906250e-03 : f32
    %2 = vector.broadcast %cst_2 : f32 to vector<1x32xf32>
    %3 = arith.mulf %1, %2 : vector<1x32xf32>
    %cst_3 = arith.constant dense<0xFF800000> : vector<1x32xf32>
    %4 = vector.multi_reduction <maximumf>, %0, %cst_3 [2] : vector<1x32x256xf32> to vector<1x32xf32>
    %c0_4 = arith.constant 0 : index
    %c0_5 = arith.constant 0 : index
    %5 = vector.load %arg2[%c0_4, %c0_5] : memref<32x2xf32, #tpu.memory_space<vmem>>, vector<32x2xf32>
    %c0_6 = arith.constant 0 : index
    %c0_7 = arith.constant 0 : index
    %6 = vector.load %arg3[%c0_6, %c0_7] : memref<2x32xf32, #tpu.memory_space<vmem>>, vector<2x32xf32>
    %cst_8 = arith.constant dense<0.000000e+00> : vector<1x2xf32>
    %7 = tpu.matmul %3, %5, %cst_8 {dimension_numbers = #tpu.dot_dimension_numbers<[1], [0], [0], [1], [0, 0, 1, 1], [], []>} : vector<1x32xf32>, vector<32x2xf32>, vector<1x2xf32> -> vector<1x2xf32>
    %cst_9 = arith.constant 0.000000e+00 : f32
    %8 = vector.broadcast %cst_9 : f32 to vector<1x2xf32>
    %9 = arith.maximumf %7, %8 : vector<1x2xf32>
    %cst_10 = arith.constant dense<0.000000e+00> : vector<1x32xf32>
    %10 = tpu.matmul %9, %6, %cst_10 {dimension_numbers = #tpu.dot_dimension_numbers<[1], [0], [0], [1], [0, 0, 1, 1], [], []>} : vector<1x2xf32>, vector<2x32xf32>, vector<1x32xf32> -> vector<1x32xf32>
    %cst_11 = arith.constant dense<0.000000e+00> : vector<1x2xf32>
    %11 = tpu.matmul %4, %5, %cst_11 {dimension_numbers = #tpu.dot_dimension_numbers<[1], [0], [0], [1], [0, 0, 1, 1], [], []>} : vector<1x32xf32>, vector<32x2xf32>, vector<1x2xf32> -> vector<1x2xf32>
    %cst_12 = arith.constant 0.000000e+00 : f32
    %12 = vector.broadcast %cst_12 : f32 to vector<1x2xf32>
    %13 = arith.maximumf %11, %12 : vector<1x2xf32>
    %cst_13 = arith.constant dense<0.000000e+00> : vector<1x32xf32>
    %14 = tpu.matmul %13, %6, %cst_13 {dimension_numbers = #tpu.dot_dimension_numbers<[1], [0], [0], [1], [0, 0, 1, 1], [], []>} : vector<1x2xf32>, vector<2x32xf32>, vector<1x32xf32> -> vector<1x32xf32>
    %15 = arith.addf %10, %14 : vector<1x32xf32>
    %cst_14 = arith.constant 0.000000e+00 : f32
    %16 = vector.broadcast %cst_14 : f32 to vector<1x32xf32>
    %17 = arith.subf %16, %15 : vector<1x32xf32>
    %18 = math.exp %17 : vector<1x32xf32>
    %cst_15 = arith.constant 1.000000e+00 : f32
    %19 = vector.broadcast %cst_15 : f32 to vector<1x32xf32>
    %20 = arith.addf %19, %18 : vector<1x32xf32>
    %cst_16 = arith.constant 1.000000e+00 : f32
    %21 = vector.broadcast %cst_16 : f32 to vector<1x32xf32>
    %22 = arith.divf %21, %20 : vector<1x32xf32>
    %23 = vector.shape_cast %22 : vector<1x32xf32> to vector<1x32x1xf32>
    %24 = vector.broadcast %23 : vector<1x32x1xf32> to vector<1x32x256xf32>
    %25 = arith.mulf %0, %24 : vector<1x32x256xf32>
    %cst_17 = arith.constant dense<0.000000e+00> : vector<1x256xf32>
    %26 = vector.multi_reduction <add>, %25, %cst_17 [1] : vector<1x32x256xf32> to vector<1x256xf32>
    %cst_18 = arith.constant 3.125000e-02 : f32
    %27 = vector.broadcast %cst_18 : f32 to vector<1x256xf32>
    %28 = arith.mulf %26, %27 : vector<1x256xf32>
    %cst_19 = arith.constant dense<0xFF800000> : vector<1x256xf32>
    %29 = vector.multi_reduction <maximumf>, %25, %cst_19 [1] : vector<1x32x256xf32> to vector<1x256xf32>
    %30 = tpu.concatenate %28, %29 in 1 : vector<1x256xf32>, vector<1x256xf32> -> vector<1x512xf32>
    %c0_20 = arith.constant 0 : index
    %c0_21 = arith.constant 0 : index
    %31 = vector.load %arg4[%c0_20, %c0_21] : memref<512x256xf32, #tpu.memory_space<vmem>>, vector<512x256xf32>
    %cst_22 = arith.constant dense<0.000000e+00> : vector<1x256xf32>
    %32 = tpu.matmul %30, %31, %cst_22 {dimension_numbers = #tpu.dot_dimension_numbers<[1], [0], [0], [1], [0, 0, 1, 1], [], []>} : vector<1x512xf32>, vector<512x256xf32>, vector<1x256xf32> -> vector<1x256xf32>
    %cst_23 = arith.constant 0.000000e+00 : f32
    %33 = vector.broadcast %cst_23 : f32 to vector<1x256xf32>
    %34 = arith.subf %33, %32 : vector<1x256xf32>
    %35 = math.exp %34 : vector<1x256xf32>
    %cst_24 = arith.constant 1.000000e+00 : f32
    %36 = vector.broadcast %cst_24 : f32 to vector<1x256xf32>
    %37 = arith.addf %36, %35 : vector<1x256xf32>
    %cst_25 = arith.constant 1.000000e+00 : f32
    %38 = vector.broadcast %cst_25 : f32 to vector<1x256xf32>
    %39 = arith.divf %38, %37 : vector<1x256xf32>
    %40 = vector.shape_cast %39 : vector<1x256xf32> to vector<1x1x256xf32>
    %41 = vector.broadcast %40 : vector<1x1x256xf32> to vector<1x32x256xf32>
    %42 = arith.mulf %25, %41 : vector<1x32x256xf32>
    %c0_26 = arith.constant 0 : index
    %c0_27 = arith.constant 0 : index
    %c0_28 = arith.constant 0 : index
    %43 = vector.load %arg5[%c0_26, %c0_27, %c0_28] : memref<1x32x256xf32, #tpu.memory_space<vmem>>, vector<1x32x256xf32>
    tpu.vector_store %arg5[%c0_26, %c0_27, %c0_28], %42 {strides = array<i32>} : memref<1x32x256xf32, #tpu.memory_space<vmem>>, vector<1x32x256xf32>,
    return
  }
  func.func @transform_0(%arg0: i32) -> (i32, i32, i32) {
    %c0_i32 = arith.constant 0 : i32
    %c0_i32_0 = arith.constant 0 : i32
    %c0_i32_1 = arith.constant 0 : i32
    return %arg0, %c0_i32, %c0_i32_0 : i32, i32, i32
  }
  func.func @transform_1(%arg0: i32) -> (i32, i32) {
    %c0_i32 = arith.constant 0 : i32
    %c0_i32_0 = arith.constant 0 : i32
    %c0_i32_1 = arith.constant 0 : i32
    return %c0_i32, %c0_i32_0 : i32, i32
  }
  func.func @transform_2(%arg0: i32) -> (i32, i32) {
    %c0_i32 = arith.constant 0 : i32
    %c0_i32_0 = arith.constant 0 : i32
    %c0_i32_1 = arith.constant 0 : i32
    return %c0_i32, %c0_i32_0 : i32, i32
  }
  func.func @transform_3(%arg0: i32) -> (i32, i32) {
    %c0_i32 = arith.constant 0 : i32
    %c0_i32_0 = arith.constant 0 : i32
    %c0_i32_1 = arith.constant 0 : i32
    return %c0_i32, %c0_i32_0 : i32, i32
  }
  func.func @transform_4(%arg0: i32) -> (i32, i32, i32) {
    %c0_i32 = arith.constant 0 : i32
    %c0_i32_0 = arith.constant 0 : i32
    %c0_i32_1 = arith.constant 0 : i32
    return %arg0, %c0_i32, %c0_i32_0 : i32, i32, i32
  }
}

</mosaic_0001>

<llo_original>
// kernel: cbam_forward.1
$region0: #{cbam_forward.1}
  #allocation0 [shape = 'u32[]', space=smem, size = 0x4, offset = 0x4, fixed_abs, tag = 'smem constant byte address 0x4 - core index']
  #allocation1 [shape = 'u32[144,128]{1,0:T(1,128)}', space=vmem, size = 0x12000, scoped, tag = 'internal scratch']
  %s0 = inlined_call_operand.vmem [shape: f32[2,32,256], index: 0, kind: input, shape index: {}]
  %s1 = inlined_call_operand.vmem [shape: f32[32,2], index: 1, kind: input, shape index: {}]
  %s2 = inlined_call_operand.vmem [shape: f32[2,32], index: 2, kind: input, shape index: {}]
  %s3 = inlined_call_operand.vmem [shape: f32[512,256], index: 3, kind: input, shape index: {}]
  %s4 = inlined_call_operand.vmem [shape: f32[2,32,256], index: 4, kind: output, shape index: {}]
  %s5 = sld [smem:[#allocation0]]
  $region49: #{cbam_forward.1} parent=0
    _
  %s7 = ssub.s32 1, %s5
  %s8 = scalar_select 0, %s7, %s5
  loop: start=0, step=1, limit=4
  $region2: #{cbam_forward.1} parent=0 // loop_pre_header
    _
  $region3: #{cbam_forward.1} parent=0 // loop_header
    %s10 = sphi 0, %s14
    %p11 = scmp.ge.s32.totalorder %s10, 4
    %s20 = sphi 0, %s22
    %s23 = sphi 0, %s20
    %s24 = sphi 0, %s23
    %s40 = sphi 0, %s24
    %s44 = sphi 0, %s44
    %s46 = sphi 0, %s44
    %s47 = sphi 0, %s46
    %s61 = sphi 0, %s47
    %s65 = sphi 0, %s65
    %s67 = sphi 0, %s65
    %s68 = sphi 0, %s67
    %s82 = sphi 0, %s68
    %s86 = sphi 0, %s86
    %s88 = sphi 0, %s86
    %s89 = sphi 0, %s88
    %s103 = sphi 0, %s89
    %s109 = sphi 0, %s111
    %s112 = sphi 0, %s109
    %s113 = sphi 0, %s112
    %s129 = sphi 0, %s113
  $region4: #{cbam_forward.1} parent=0 // loop_header_branch
    %13 = sbr.rel (%p11) target = $region8
  $region5: #{cbam_forward.1} parent=0 // loop_body
    %s15 = ssub.s32 %s10, 1
    %s16 = ssub.s32 %s10, 2
    %s17 = sadd.s32 %s10, 1
    %s18 = ssub.s32 %s10, %s17
    %p19 = scmp.eq.s32.totalorder %s18, 0
    %s21 = sadd.s32 %s20, 1
    %s22 = scalar_select %p19, %s20, %s21
    %p25 = pneg %p19
    %p26 = scmp.eq.s32.totalorder %s10, 1
    %p27 = por %p25, %p26
    %p28 = scmp.ne.s32.totalorder %s20, %s23
    %p29 = scmp.eq.s32.totalorder %s10, 0
    %p30 = por %p28, %p29
    %p31 = scmp.ne.s32.totalorder %s20, %s23
    %p32 = scmp.eq.s32.totalorder %s15, 1
    %p33 = por %p31, %p32
    %p34 = scmp.ne.s32.totalorder %s23, %s24
    %p35 = scmp.eq.s32.totalorder %s15, 0
    %p36 = por %p34, %p35
    %p37 = scmp.ne.s32.totalorder %s23, %s24
    %p38 = scmp.eq.s32.totalorder %s16, 1
    %p39 = por %p37, %p38
    %p41 = scmp.ne.s32.totalorder %s24, %s40
    %p42 = scmp.eq.s32.totalorder %s16, 0
    %p43 = por %p41, %p42
    %s45 = sadd.s32 %s44, 1
    %p48 = scmp.eq.s32.totalorder %s10, 1
    %p49 = scmp.ne.s32.totalorder %s44, %s46
    %p50 = scmp.eq.s32.totalorder %s10, 0
    %p51 = por %p49, %p50
    %p52 = scmp.ne.s32.totalorder %s44, %s46
    %p53 = scmp.eq.s32.totalorder %s15, 1
    %p54 = por %p52, %p53
    %p55 = scmp.ne.s32.totalorder %s46, %s47
    %p56 = scmp.eq.s32.totalorder %s15, 0
    %p57 = por %p55, %p56
    %p58 = scmp.ne.s32.totalorder %s46, %s47
    %p59 = scmp.eq.s32.totalorder %s16, 1
    %p60 = por %p58, %p59
    %p62 = scmp.ne.s32.totalorder %s47, %s61
    %p63 = scmp.eq.s32.totalorder %s16, 0
    %p64 = por %p62, %p63
    %s66 = sadd.s32 %s65, 1
    %p69 = scmp.eq.s32.totalorder %s10, 1
    %p70 = scmp.ne.s32.totalorder %s65, %s67
    %p71 = scmp.eq.s32.totalorder %s10, 0
    %p72 = por %p70, %p71
    %p73 = scmp.ne.s32.totalorder %s65, %s67
    %p74 = scmp.eq.s32.totalorder %s15, 1
    %p75 = por %p73, %p74
    %p76 = scmp.ne.s32.totalorder %s67, %s68
    %p77 = scmp.eq.s32.totalorder %s15, 0
    %p78 = por %p76, %p77
    %p79 = scmp.ne.s32.totalorder %s67, %s68
    %p80 = scmp.eq.s32.totalorder %s16, 1
    %p81 = por %p79, %p80
    %p83 = scmp.ne.s32.totalorder %s68, %s82
    %p84 = scmp.eq.s32.totalorder %s16, 0
    %p85 = por %p83, %p84
    %s87 = sadd.s32 %s86, 1
    %p90 = scmp.eq.s32.totalorder %s10, 1
    %p91 = scmp.ne.s32.totalorder %s86, %s88
    %p92 = scmp.eq.s32.totalorder %s10, 0
    %p93 = por %p91, %p92
    %p94 = scmp.ne.s32.totalorder %s86, %s88
    %p95 = scmp.eq.s32.totalorder %s15, 1
    %p96 = por %p94, %p95
    %p97 = scmp.ne.s32.totalorder %s88, %s89
    %p98 = scmp.eq.s32.totalorder %s15, 0
    %p99 = por %p97, %p98
    %p100 = scmp.ne.s32.totalorder %s88, %s89
    %p101 = scmp.eq.s32.totalorder %s16, 1
    %p102 = por %p100, %p101
    %p104 = scmp.ne.s32.totalorder %s89, %s103
    %p105 = scmp.eq.s32.totalorder %s16, 0
    %p106 = por %p104, %p105
    %s107 = ssub.s32 %s10, %s17
    %p108 = scmp.eq.s32.totalorder %s107, 0
    %s110 = sadd.s32 %s109, 1
    %s111 = scalar_select %p108, %s109, %s110
    %p114 = pneg %p108
    %p115 = scmp.eq.s32.totalorder %s10, 1
    %p116 = por %p114, %p115
    %p117 = scmp.ne.s32.totalorder %s109, %s112
    %p118 = scmp.eq.s32.totalorder %s10, 0
    %p119 = por %p117, %p118
    %p120 = scmp.ne.s32.totalorder %s109, %s112
    %p121 = scmp.eq.s32.totalorder %s15, 1
    %p122 = por %p120, %p121
    %p123 = scmp.ne.s32.totalorder %s112, %s113
    %p124 = scmp.eq.s32.totalorder %s15, 0
    %p125 = por %p123, %p124
    %p126 = scmp.ne.s32.totalorder %s112, %s113
    %p127 = scmp.eq.s32.totalorder %s16, 1
    %p128 = por %p126, %p127
    %p130 = scmp.ne.s32.totalorder %s113, %s129
    %p131 = scmp.eq.s32.totalorder %s16, 0
    %p132 = por %p130, %p131
    %p133 = scmp.le.s32.totalorder 1, %s10
    %p134 = scmp.lt.s32.totalorder %s10, 3
    %p135 = pnand %p133, %p134
    %p136 = pneg %p135
    // Predicated region
    $region9: #{cbam_forward.1} parent=5 // pred_check
      _
    $region10: #{cbam_forward.1} parent=5 // pred_check_branch
      %138 = sbr.rel (%p135) target = $region12
    $region11: #{cbam_forward.1} parent=5 // pred_region
      %s139 = ssub.s32 %s10, 1
      // Predicated region
      $region13: #{cbam_forward.1} parent=11 // pred_check
        %p140 = pneg %p57
      $region14: #{cbam_forward.1} parent=11 // pred_check_branch
        %142 = sbr.rel (%p140) target = $region16
      $region15: #{cbam_forward.1} parent=11 // pred_region
        _
      $region16: #{cbam_forward.1} parent=11 // pred_fallthru
        _
      // Predicated region
      $region17: #{cbam_forward.1} parent=11 // pred_check
        %p143 = pneg %p78
      $region18: #{cbam_forward.1} parent=11 // pred_check_branch
        %145 = sbr.rel (%p143) target = $region20
      $region19: #{cbam_forward.1} parent=11 // pred_region
        _
      $region20: #{cbam_forward.1} parent=11 // pred_fallthru
        _
      // Predicated region
      $region21: #{cbam_forward.1} parent=11 // pred_check
        %p146 = pneg %p99
      $region22: #{cbam_forward.1} parent=11 // pred_check_branch
        %148 = sbr.rel (%p146) target = $region24
      $region23: #{cbam_forward.1} parent=11 // pred_region
        _
      $region24: #{cbam_forward.1} parent=11 // pred_fallthru
        _
    $region12: #{cbam_forward.1} parent=5 // pred_fallthru
      _
    %p149 = scmp.lt.s32.totalorder %s10, 2
    // Predicated region
    $region25: #{cbam_forward.1} parent=5 // pred_check
      %p150 = pneg %p149
    $region26: #{cbam_forward.1} parent=5 // pred_check_branch
      %152 = sbr.rel (%p150) target = $region28
    $region27: #{cbam_forward.1} parent=5 // pred_region
      // Predicated region
      $region29: #{cbam_forward.1} parent=27 // pred_check
        %p153 = pneg %p30
      $region30: #{cbam_forward.1} parent=27 // pred_check_branch
        %155 = sbr.rel (%p153) target = $region32
      $region31: #{cbam_forward.1} parent=27 // pred_region
        %p156 = scmp.lt.s32.totalorder %s10, 1
        %s157 = scalar_select %p156, %s10, 1
        %s158 = smul.addr %s157, 8
        %s159 = smul.addr %s158, 8
        %s160 = scalar_lea.vmem %s0, %s159
      $region32: #{cbam_forward.1} parent=27 // pred_fallthru
        _
    $region28: #{cbam_forward.1} parent=5 // pred_fallthru
      _
    %p161 = scmp.le.s32.totalorder 1, %s10
    %p162 = scmp.lt.s32.totalorder %s10, 3
    %p163 = pnand %p161, %p162
    %p164 = pneg %p163
    // Predicated region
    $region33: #{cbam_forward.1} parent=5 // pred_check
      _
    $region34: #{cbam_forward.1} parent=5 // pred_check_branch
      %166 = sbr.rel (%p163) target = $region36
    $region35: #{cbam_forward.1} parent=5 // pred_region
      %s167 = ssub.s32 %s10, 1
      %p168 = scmp.lt.s32.totalorder %s15, 1
      %s169 = scalar_select %p168, %s15, 1
      %s170 = smul.addr %s169, 8
      %s171 = smul.addr %s170, 8
      %s172 = scalar_lea.vmem %s0, %s171
      %p173 = pneg %p36
      %p174 = pneg %p33
      %p175 = pneg %p57
      %p176 = pneg %p54
      %p177 = pneg %p78
      %p178 = pneg %p75
      %p179 = pneg %p99
      %p180 = pneg %p96
      %p181 = pneg %p125
      %p182 = pneg %p122
      %p183 = scmp.lt.s32.totalorder %s15, 1
      %s184 = scalar_select %p183, %s15, 1
      %s185 = smul.addr %s184, 8
      %s186 = smul.addr %s185, 8
      %s187 = scalar_lea.vmem %s4, %s186
      %p188 = scmp.lt.s32.totalorder %s15, 1
      %s189 = scalar_select %p188, %s15, 1
      %s190 = smul.addr %s189, 8
      %s191 = smul.addr %s190, 8
      %s192 = scalar_lea.vmem %s0, %s191
      %p193 = scmp.lt.s32.totalorder %s15, 1
      %s194 = scalar_select %p193, %s15, 1
      %s195 = smul.addr %s194, 8
      %s196 = smul.addr %s195, 8
      %s197 = scalar_lea.vmem %s4, %s196
      %v198 = vld [vmem:[%s192] sm:$0xff]
      %v199 = vld [vmem:[%s192 + $0x8] sm:$0xff]
      %v200 = vld [vmem:[%s192 + $0x10] sm:$0xff]
      %v201 = vld [vmem:[%s192 + $0x18] sm:$0xff]
      %v202 = vld [vmem:[%s192 + $0x20] sm:$0xff]
      %v203 = vld [vmem:[%s192 + $0x28] sm:$0xff]
      %v204 = vld [vmem:[%s192 + $0x30] sm:$0xff]
      %v205 = vld [vmem:[%s192 + $0x38] sm:$0xff]
      %v206 = vadd.f32 %v198, %v199
      %207 = vadd.xlane.f32.xlu0 %v206
      %v208 = vpop.xlane.xlu0 %207
      %v209 = vadd.f32 %v200, %v201
      %210 = vadd.xlane.f32.xlu0 %v209
      %v211 = vpop.xlane.xlu0 %210
      %v212 = vadd.f32 %v202, %v203
      %213 = vadd.xlane.f32.xlu0 %v212
      %v214 = vpop.xlane.xlu0 %213
      %v215 = vadd.f32 %v204, %v205
      %216 = vadd.xlane.f32.xlu0 %v215
      %v217 = vpop.xlane.xlu0 %216
      %v218 = vmul.f32 %v208, 0.00390625
      %v219 = vmul.f32 %v211, 0.00390625
      %v220 = vmul.f32 %v214, 0.00390625
      %v221 = vmul.f32 %v217, 0.00390625
      %v222 = vmax.f32 %v198, %v199
      %223 = vmax.xlane.f32.xlu0 %v222
      %v224 = vpop.xlane.xlu0 %223
      %v225 = vmax.f32 %v200, %v201
      %226 = vmax.xlane.f32.xlu0 %v225
      %v227 = vpop.xlane.xlu0 %226
      %v228 = vmax.f32 %v202, %v203
      %229 = vmax.xlane.f32.xlu0 %v228
      %v230 = vpop.xlane.xlu0 %229
      %v231 = vmax.f32 %v204, %v205
      %232 = vmax.xlane.f32.xlu0 %v231
      %v233 = vpop.xlane.xlu0 %232
      %v234 = vld [vmem:[%s1] sm:$0xff]
      %v235 = vld [vmem:[%s1 + $0x8] sm:$0xff]
      %v236 = vld [vmem:[%s1 + $0x10] sm:$0xff]
      %v237 = vld [vmem:[%s1 + $0x18] sm:$0xff]
      %v238 = vld [vmem:[%s2] sm:$0x3]
      %v243 = vlaneseq
      %v244 = vand.u32 %v243, 127
      %v245 = vlaneseq
      %v246 = vshrl.u32 %v245, 7
      %v247 = vsub.s32 %v244, %v246
      %v248 = vrot.slane %v218, %v247
      %v249 = vadd.s32 %v244, 4294967288
      %v250 = vlaneseq
      %v251 = vshrl.u32 %v250, 7
      %v252 = vsub.s32 %v249, %v251
      %v253 = vrot.slane %v219, %v252
      %vm254 = vcmask 130112
      %v255 = vsel %vm254, %v253, %v248
      %v256 = vadd.s32 %v244, 4294967280
      %v257 = vlaneseq
      %v258 = vshrl.u32 %v257, 7
      %v259 = vsub.s32 %v256, %v258
      %v260 = vrot.slane %v220, %v259
      %vm261 = vcmask 195712
      %v262 = vsel %vm261, %v260, %v255
      %v263 = vadd.s32 %v244, 4294967272
      %v264 = vlaneseq
      %v265 = vshrl.u32 %v264, 7
      %v266 = vsub.s32 %v263, %v265
      %v267 = vrot.slane %v221, %v266
      %vm268 = vcmask 261312
      %v269 = vsel %vm268, %v267, %v262
      %vm270 = vcmask 261120
      %v271 = vsel %vm270, %v269, 0
      %273 = vmatprep.subr.mxu0 0.0
      %274 = vmatpush1.msra.mxu0 0.0
      %275 = vmatprep.subr.mxu0 0.0
      %276 = vmatpush1.msra.mxu0 0.0
      %277 = vmatprep.subr.mxu0 0.0
      %278 = vmatpush1.msra.mxu0 0.0
      %279 = vmatprep.subr.mxu0 0.0
      %280 = vmatpush1.msra.mxu0 0.0
      %281 = vmatprep.subr.mxu0 0.0
      %282 = vmatpush1.msra.mxu0 0.0
      %283 = vmatprep.subr.mxu0 0.0
      %284 = vmatpush1.msra.mxu0 0.0
      %285 = vmatprep.subr.mxu0 0.0
      %286 = vmatpush1.msra.mxu0 0.0
      %287 = vmatprep.subr.mxu0 0.0
      %288 = vmatpush1.msra.mxu0 0.0
      %289 = vmatprep.subr.mxu0 0.0
      %290 = vmatpush1.msra.mxu0 0.0
      %291 = vmatprep.subr.mxu0 0.0
      %292 = vmatpush1.msra.mxu0 0.0
      %293 = vmatprep.subr.mxu0 0.0
      %294 = vmatpush1.msra.mxu0 0.0
      %295 = vmatprep.subr.mxu0 0.0
      %296 = vmatpush1.msra.mxu0 0.0
      %297 = vmatprep.subr.mxu0 0.0
      %298 = vmatpush1.msra.mxu0 %v237
      %299 = vmatprep.subr.mxu0 0.0
      %300 = vmatpush1.msra.mxu0 %v236
      %301 = vmatprep.subr.mxu0 0.0
      %302 = vmatpush1.msra.mxu0 %v235
      %303 = vmatprep.subr.mxu0 0.0
      %304 = vmatpush1.msra.mxu0 %v234
      %305 = vmatprep.subr.mxu0 0.0
      %306 = vmatpush2.msra.mxu0 0.0
      %307 = vmatprep.subr.mxu0 0.0
      %308 = vmatpush2.msra.mxu0 0.0
      %309 = vmatprep.subr.mxu0 0.0
      %310 = vmatpush2.msra.mxu0 0.0
      %311 = vmatprep.subr.mxu0 0.0
      %312 = vmatpush2.msra.mxu0 0.0
      %313 = vmatprep.subr.mxu0 0.0
      %314 = vmatpush2.msra.mxu0 0.0
      %315 = vmatprep.subr.mxu0 0.0
      %316 = vmatpush2.msra.mxu0 0.0
      %317 = vmatprep.subr.mxu0 0.0
      %318 = vmatpush2.msra.mxu0 0.0
      %319 = vmatprep.subr.mxu0 0.0
      %320 = vmatpush2.msra.mxu0 0.0
      %321 = vmatprep.subr.mxu0 0.0
      %322 = vmatpush2.msra.mxu0 0.0
      %323 = vmatprep.subr.mxu0 0.0
      %324 = vmatpush2.msra.mxu0 0.0
      %325 = vmatprep.subr.mxu0 0.0
      %326 = vmatpush2.msra.mxu0 0.0
      %327 = vmatprep.subr.mxu0 0.0
      %328 = vmatpush2.msra.mxu0 0.0
      %329 = vmatprep.subr.mxu0 0.0
      %330 = vmatpush2.msra.mxu0 0.0
      %331 = vmatprep.subr.mxu0 0.0
      %332 = vmatpush2.msra.mxu0 0.0
      %333 = vmatprep.subr.mxu0 0.0
      %334 = vmatpush2.msra.mxu0 0.0
      %335 = vmatprep.subr.mxu0 0.0
      %336 = vmatpush2.msra.mxu0 0.0
      %337 = vmatprep.mubr.f32.mxu0 0.0
      %338 = vmatmul.mubr.f32.gmra.mxu0 %v271
      %v339 = vpop.f32.mrf.mxu0
      %v340 = vadd.f32 0.0, %v339
      %v341 = vpop.f32.mrf.mxu0
      %342 = vdwg.mxu0
      %v343 = vmax.f32 %v340, 0.0
      %v348 = vlaneseq
      %v349 = vshrl.u32 %v348, 7
      %v350 = vsub.s32 %v244, %v349
      %v351 = vrot.slane %v224, %v350
      %v352 = vlaneseq
      %v353 = vshrl.u32 %v352, 7
      %v354 = vsub.s32 %v249, %v353
      %v355 = vrot.slane %v227, %v354
      %v356 = vsel %vm254, %v355, %v351
      %v357 = vlaneseq
      %v358 = vshrl.u32 %v357, 7
      %v359 = vsub.s32 %v256, %v358
      %v360 = vrot.slane %v230, %v359
      %v361 = vsel %vm261, %v360, %v356
      %v362 = vlaneseq
      %v363 = vshrl.u32 %v362, 7
      %v364 = vsub.s32 %v263, %v363
      %v365 = vrot.slane %v233, %v364
      %v366 = vsel %vm268, %v365, %v361
      %v367 = vsel %vm270, %v366, 0
      %369 = vmatprep.subr.mxu0 0.0
      %370 = vmatpush1.msra.mxu0 0.0
      %371 = vmatprep.subr.mxu0 0.0
      %372 = vmatpush1.msra.mxu0 0.0
      %373 = vmatprep.subr.mxu0 0.0
      %374 = vmatpush1.msra.mxu0 0.0
      %375 = vmatprep.subr.mxu0 0.0
      %376 = vmatpush1.msra.mxu0 0.0
      %377 = vmatprep.subr.mxu0 0.0
      %378 = vmatpush1.msra.mxu0 0.0
      %379 = vmatprep.subr.mxu0 0.0
      %380 = vmatpush1.msra.mxu0 0.0
      %381 = vmatprep.subr.mxu0 0.0
      %382 = vmatpush1.msra.mxu0 0.0
      %383 = vmatprep.subr.mxu0 0.0
      %384 = vmatpush1.msra.mxu0 0.0
      %385 = vmatprep.subr.mxu0 0.0
      %386 = vmatpush1.msra.mxu0 0.0
      %387 = vmatprep.subr.mxu0 0.0
      %388 = vmatpush1.msra.mxu0 0.0
      %389 = vmatprep.subr.mxu0 0.0
      %390 = vmatpush1.msra.mxu0 0.0
      %391 = vmatprep.subr.mxu0 0.0
      %392 = vmatpush1.msra.mxu0 0.0
      %393 = vmatprep.subr.mxu0 0.0
      %394 = vmatpush1.msra.mxu0 %v237
      %395 = vmatprep.subr.mxu0 0.0
      %396 = vmatpush1.msra.mxu0 %v236
      %397 = vmatprep.subr.mxu0 0.0
      %398 = vmatpush1.msra.mxu0 %v235
      %399 = vmatprep.subr.mxu0 0.0
      %400 = vmatpush1.msra.mxu0 %v234
      %401 = vmatprep.subr.mxu0 0.0
      %402 = vmatpush2.msra.mxu0 0.0
      %403 = vmatprep.subr.mxu0 0.0
      %404 = vmatpush2.msra.mxu0 0.0
      %405 = vmatprep.subr.mxu0 0.0
      %406 = vmatpush2.msra.mxu0 0.0
      %407 = vmatprep.subr.mxu0 0.0
      %408 = vmatpush2.msra.mxu0 0.0
      %409 = vmatprep.subr.mxu0 0.0
      %410 = vmatpush2.msra.mxu0 0.0
      %411 = vmatprep.subr.mxu0 0.0
      %412 = vmatpush2.msra.mxu0 0.0
      %413 = vmatprep.subr.mxu0 0.0
      %414 = vmatpush2.msra.mxu0 0.0
      %415 = vmatprep.subr.mxu0 0.0
      %416 = vmatpush2.msra.mxu0 0.0
      %417 = vmatprep.subr.mxu0 0.0
      %418 = vmatpush2.msra.mxu0 0.0
      %419 = vmatprep.subr.mxu0 0.0
      %420 = vmatpush2.msra.mxu0 0.0
      %421 = vmatprep.subr.mxu0 0.0
      %422 = vmatpush2.msra.mxu0 0.0
      %423 = vmatprep.subr.mxu0 0.0
      %424 = vmatpush2.msra.mxu0 0.0
      %425 = vmatprep.subr.mxu0 0.0
      %426 = vmatpush2.msra.mxu0 0.0
      %427 = vmatprep.subr.mxu0 0.0
      %428 = vmatpush2.msra.mxu0 0.0
      %429 = vmatprep.subr.mxu0 0.0
      %430 = vmatpush2.msra.mxu0 0.0
      %431 = vmatprep.subr.mxu0 0.0
      %432 = vmatpush2.msra.mxu0 0.0
      %433 = vmatprep.mubr.f32.mxu0 0.0
      %434 = vmatmul.mubr.f32.gmra.mxu0 %v367
      %v435 = vpop.f32.mrf.mxu0
      %v436 = vadd.f32 0.0, %v435
      %v437 = vpop.f32.mrf.mxu0
      %438 = vdwg.mxu0
      %v439 = vmax.f32 %v436, 0.0
      %vm440 = vcmask 15360
      %v442 = vsel %vm440, %v439, 0
      %vm444 = vcmask 1041408
      %v446 = vsel %vm444, %v238, 0
      %448 = vmatprep.subr.mxu0 0.0
      %449 = vmatpush1.msra.mxu0 0.0
      %450 = vmatprep.subr.mxu0 0.0
      %451 = vmatpush1.msra.mxu0 0.0
      %452 = vmatprep.subr.mxu0 0.0
      %453 = vmatpush1.msra.mxu0 0.0
      %454 = vmatprep.subr.mxu0 0.0
      %455 = vmatpush1.msra.mxu0 0.0
      %456 = vmatprep.subr.mxu0 0.0
      %457 = vmatpush1.msra.mxu0 0.0
      %458 = vmatprep.subr.mxu0 0.0
      %459 = vmatpush1.msra.mxu0 0.0
      %460 = vmatprep.subr.mxu0 0.0
      %461 = vmatpush1.msra.mxu0 0.0
      %462 = vmatprep.subr.mxu0 0.0
      %463 = vmatpush1.msra.mxu0 0.0
      %464 = vmatprep.subr.mxu0 0.0
      %465 = vmatpush1.msra.mxu0 0.0
      %466 = vmatprep.subr.mxu0 0.0
      %467 = vmatpush1.msra.mxu0 0.0
      %468 = vmatprep.subr.mxu0 0.0
      %469 = vmatpush1.msra.mxu0 0.0
      %470 = vmatprep.subr.mxu0 0.0
      %471 = vmatpush1.msra.mxu0 0.0
      %472 = vmatprep.subr.mxu0 0.0
      %473 = vmatpush1.msra.mxu0 0.0
      %474 = vmatprep.subr.mxu0 0.0
      %475 = vmatpush1.msra.mxu0 0.0
      %476 = vmatprep.subr.mxu0 0.0
      %477 = vmatpush1.msra.mxu0 0.0
      %478 = vmatprep.subr.mxu0 0.0
      %479 = vmatpush1.msra.mxu0 %v446
      %480 = vmatprep.subr.mxu0 0.0
      %481 = vmatpush2.msra.mxu0 0.0
      %482 = vmatprep.subr.mxu0 0.0
      %483 = vmatpush2.msra.mxu0 0.0
      %484 = vmatprep.subr.mxu0 0.0
      %485 = vmatpush2.msra.mxu0 0.0
      %486 = vmatprep.subr.mxu0 0.0
      %487 = vmatpush2.msra.mxu0 0.0
      %488 = vmatprep.subr.mxu0 0.0
      %489 = vmatpush2.msra.mxu0 0.0
      %490 = vmatprep.subr.mxu0 0.0
      %491 = vmatpush2.msra.mxu0 0.0
      %492 = vmatprep.subr.mxu0 0.0
      %493 = vmatpush2.msra.mxu0 0.0
      %494 = vmatprep.subr.mxu0 0.0
      %495 = vmatpush2.msra.mxu0 0.0
      %496 = vmatprep.subr.mxu0 0.0
      %497 = vmatpush2.msra.mxu0 0.0
      %498 = vmatprep.subr.mxu0 0.0
      %499 = vmatpush2.msra.mxu0 0.0
      %500 = vmatprep.subr.mxu0 0.0
      %501 = vmatpush2.msra.mxu0 0.0
      %502 = vmatprep.subr.mxu0 0.0
      %503 = vmatpush2.msra.mxu0 0.0
      %504 = vmatprep.subr.mxu0 0.0
      %505 = vmatpush2.msra.mxu0 0.0
      %506 = vmatprep.subr.mxu0 0.0
      %507 = vmatpush2.msra.mxu0 0.0
      %508 = vmatprep.subr.mxu0 0.0
      %509 = vmatpush2.msra.mxu0 0.0
      %510 = vmatprep.subr.mxu0 0.0
      %511 = vmatpush2.msra.mxu0 0.0
      %512 = vmatprep.mubr.f32.mxu0 0.0
      %513 = vmatmul.mubr.f32.gmra.mxu0 %v442
      %v514 = vpop.f32.mrf.mxu0
      %v515 = vadd.f32 0.0, %v514
      %v516 = vpop.f32.mrf.mxu0
      %517 = vdwg.mxu0
      %v519 = vsel %vm440, %v343, 0
      %521 = vmatprep.subr.mxu0 0.0
      %522 = vmatpush1.msra.mxu0 0.0
      %523 = vmatprep.subr.mxu0 0.0
      %524 = vmatpush1.msra.mxu0 0.0
      %525 = vmatprep.subr.mxu0 0.0
      %526 = vmatpush1.msra.mxu0 0.0
      %527 = vmatprep.subr.mxu0 0.0
      %528 = vmatpush1.msra.mxu0 0.0
      %529 = vmatprep.subr.mxu0 0.0
      %530 = vmatpush1.msra.mxu0 0.0
      %531 = vmatprep.subr.mxu0 0.0
      %532 = vmatpush1.msra.mxu0 0.0
      %533 = vmatprep.subr.mxu0 0.0
      %534 = vmatpush1.msra.mxu0 0.0
      %535 = vmatprep.subr.mxu0 0.0
      %536 = vmatpush1.msra.mxu0 0.0
      %537 = vmatprep.subr.mxu0 0.0
      %538 = vmatpush1.msra.mxu0 0.0
      %539 = vmatprep.subr.mxu0 0.0
      %540 = vmatpush1.msra.mxu0 0.0
      %541 = vmatprep.subr.mxu0 0.0
      %542 = vmatpush1.msra.mxu0 0.0
      %543 = vmatprep.subr.mxu0 0.0
      %544 = vmatpush1.msra.mxu0 0.0
      %545 = vmatprep.subr.mxu0 0.0
      %546 = vmatpush1.msra.mxu0 0.0
      %547 = vmatprep.subr.mxu0 0.0
      %548 = vmatpush1.msra.mxu0 0.0
      %549 = vmatprep.subr.mxu0 0.0
      %550 = vmatpush1.msra.mxu0 0.0
      %551 = vmatprep.subr.mxu0 0.0
      %552 = vmatpush1.msra.mxu0 %v446
      %553 = vmatprep.subr.mxu0 0.0
      %554 = vmatpush2.msra.mxu0 0.0
      %555 = vmatprep.subr.mxu0 0.0
      %556 = vmatpush2.msra.mxu0 0.0
      %557 = vmatprep.subr.mxu0 0.0
      %558 = vmatpush2.msra.mxu0 0.0
      %559 = vmatprep.subr.mxu0 0.0
      %560 = vmatpush2.msra.mxu0 0.0
      %561 = vmatprep.subr.mxu0 0.0
      %562 = vmatpush2.msra.mxu0 0.0
      %563 = vmatprep.subr.mxu0 0.0
      %564 = vmatpush2.msra.mxu0 0.0
      %565 = vmatprep.subr.mxu0 0.0
      %566 = vmatpush2.msra.mxu0 0.0
      %567 = vmatprep.subr.mxu0 0.0
      %568 = vmatpush2.msra.mxu0 0.0
      %569 = vmatprep.subr.mxu0 0.0
      %570 = vmatpush2.msra.mxu0 0.0
      %571 = vmatprep.subr.mxu0 0.0
      %572 = vmatpush2.msra.mxu0 0.0
      %573 = vmatprep.subr.mxu0 0.0
      %574 = vmatpush2.msra.mxu0 0.0
      %575 = vmatprep.subr.mxu0 0.0
      %576 = vmatpush2.msra.mxu0 0.0
      %577 = vmatprep.subr.mxu0 0.0
      %578 = vmatpush2.msra.mxu0 0.0
      %579 = vmatprep.subr.mxu0 0.0
      %580 = vmatpush2.msra.mxu0 0.0
      %581 = vmatprep.subr.mxu0 0.0
      %582 = vmatpush2.msra.mxu0 0.0
      %583 = vmatprep.subr.mxu0 0.0
      %584 = vmatpush2.msra.mxu0 0.0
      %585 = vmatprep.mubr.f32.mxu0 0.0
      %586 = vmatmul.mubr.f32.gmra.mxu0 %v519
      %v587 = vpop.f32.mrf.mxu0
      %v588 = vadd.f32 %v515, %v587
      %v589 = vpop.f32.mrf.mxu0
      %590 = vdwg.mxu0
      %v591 = vsub.f32 0.0, %v588
      %v592 = vmul.f32 %v591, 1.442695
      %v593 = vpow.pop %v592
      %v594 = vadd.f32 %v593, 1.0
      %v595 = vrcp.pop %v594
      %v596 = vmul.f32 1.0, %v595
      %v597 = vlaneseq
      %v598 = vshrl.u32 %v597, 7
      %v599 = vsub.s32 0, %v598
      %v600 = vrot.slane %v596, %v599
      %602 = vbcast.lane.b32.xlu0 %v600, 256
      %v603 = vpop.permute.xlu0 %602
      %s605 = sor.u32 256, 8
      %606 = vbcast.lane.b32.xlu0 %v600, %s605
      %v607 = vpop.permute.xlu0 %606
      %s609 = sor.u32 256, 16
      %610 = vbcast.lane.b32.xlu0 %v600, %s609
      %v611 = vpop.permute.xlu0 %610
      %s613 = sor.u32 256, 24
      %614 = vbcast.lane.b32.xlu0 %v600, %s613
      %v615 = vpop.permute.xlu0 %614
      %v616 = vmul.f32 %v198, %v603
      %v617 = vmul.f32 %v199, %v603
      %v618 = vmul.f32 %v200, %v607
      %v619 = vmul.f32 %v201, %v607
      %v620 = vmul.f32 %v202, %v611
      %v621 = vmul.f32 %v203, %v611
      %v622 = vmul.f32 %v204, %v615
      %v623 = vmul.f32 %v205, %v615
      %v624 = vadd.f32 %v616, %v618
      %v625 = vadd.f32 %v624, %v620
      %v626 = vadd.f32 %v625, %v622
      %v627 = vrot.slane %v626, 4
      %v628 = vadd.f32 %v626, %v627
      %v629 = vrot.slane %v628, 2
      %v630 = vadd.f32 %v628, %v629
      %v631 = vrot.slane %v630, 1
      %v632 = vadd.f32 %v630, %v631
      %v633 = vadd.f32 %v617, %v619
      %v634 = vadd.f32 %v633, %v621
      %v635 = vadd.f32 %v634, %v623
      %v636 = vrot.slane %v635, 4
      %v637 = vadd.f32 %v635, %v636
      %v638 = vrot.slane %v637, 2
      %v639 = vadd.f32 %v637, %v638
      %v640 = vrot.slane %v639, 1
      %v641 = vadd.f32 %v639, %v640
      %v642 = vmul.f32 %v632, 0.03125
      %v643 = vmul.f32 %v641, 0.03125
      %v644 = vmax.f32 %v616, %v620
      %v645 = vmax.f32 %v618, %v622
      %v646 = vmax.f32 %v644, %v645
      %v647 = vrot.slane %v646, 4
      %v648 = vmax.f32 %v646, %v647
      %v649 = vrot.slane %v648, 2
      %v650 = vmax.f32 %v648, %v649
      %v651 = vrot.slane %v650, 1
      %v652 = vmax.f32 %v650, %v651
      %v653 = vmax.f32 %v617, %v621
      %v654 = vmax.f32 %v619, %v623
      %v655 = vmax.f32 %v653, %v654
      %v656 = vrot.slane %v655, 4
      %v657 = vmax.f32 %v655, %v656
      %v658 = vrot.slane %v657, 2
      %v659 = vmax.f32 %v657, %v658
      %v660 = vrot.slane %v659, 1
      %v661 = vmax.f32 %v659, %v660
      %v662 = vld [vmem:[%s3] sm:$0xff]
      %v663 = vld [vmem:[%s3 + $0x8] sm:$0xff]
      %v664 = vld [vmem:[%s3 + $0x10] sm:$0xff]
      %v665 = vld [vmem:[%s3 + $0x18] sm:$0xff]
      %v666 = vld [vmem:[%s3 + $0x20] sm:$0xff]
      %v667 = vld [vmem:[%s3 + $0x28] sm:$0xff]
      %v668 = vld [vmem:[%s3 + $0x30] sm:$0xff]
      %v669 = vld [vmem:[%s3 + $0x38] sm:$0xff]
      %v670 = vld [vmem:[%s3 + $0x40] sm:$0xff]
      %v671 = vld [vmem:[%s3 + $0x48] sm:$0xff]
      %v672 = vld [vmem:[%s3 + $0x50] sm:$0xff]
      %v673 = vld [vmem:[%s3 + $0x58] sm:$0xff]
      %v674 = vld [vmem:[%s3 + $0x60] sm:$0xff]
      %v675 = vld [vmem:[%s3 + $0x68] sm:$0xff]
      %v676 = vld [vmem:[%s3 + $0x70] sm:$0xff]
      %v677 = vld [vmem:[%s3 + $0x78] sm:$0xff]
      %v678 = vld [vmem:[%s3 + $0x80] sm:$0xff]
      %v679 = vld [vmem:[%s3 + $0x88] sm:$0xff]
      %v680 = vld [vmem:[%s3 + $0x90] sm:$0xff]
      %v681 = vld [vmem:[%s3 + $0x98] sm:$0xff]
      %v682 = vld [vmem:[%s3 + $0xa0] sm:$0xff]
      %v683 = vld [vmem:[%s3 + $0xa8] sm:$0xff]
      %v684 = vld [vmem:[%s3 + $0xb0] sm:$0xff]
      %v685 = vld [vmem:[%s3 + $0xb8] sm:$0xff]
      %v686 = vld [vmem:[%s3 + $0xc0] sm:$0xff]
      %v687 = vld [vmem:[%s3 + $0xc8] sm:$0xff]
      %v688 = vld [vmem:[%s3 + $0xd0] sm:$0xff]
      %v689 = vld [vmem:[%s3 + $0xd8] sm:$0xff]
      %v690 = vld [vmem:[%s3 + $0xe0] sm:$0xff]
      %v691 = vld [vmem:[%s3 + $0xe8] sm:$0xff]
      %v692 = vld [vmem:[%s3 + $0xf0] sm:$0xff]
      %v693 = vld [vmem:[%s3 + $0xf8] sm:$0xff]
      %v694 = vld [vmem:[%s3 + $0x100] sm:$0xff]
      %v695 = vld [vmem:[%s3 + $0x108] sm:$0xff]
      %v696 = vld [vmem:[%s3 + $0x110] sm:$0xff]
      %v697 = vld [vmem:[%s3 + $0x118] sm:$0xff]
      %v698 = vld [vmem:[%s3 + $0x120] sm:$0xff]
      %v699 = vld [vmem:[%s3 + $0x128] sm:$0xff]
      %v700 = vld [vmem:[%s3 + $0x130] sm:$0xff]
      %v701 = vld [vmem:[%s3 + $0x138] sm:$0xff]
      %v702 = vld [vmem:[%s3 + $0x140] sm:$0xff]
      %v703 = vld [vmem:[%s3 + $0x148] sm:$0xff]
      %v704 = vld [vmem:[%s3 + $0x150] sm:$0xff]
      %v705 = vld [vmem:[%s3 + $0x158] sm:$0xff]
      %v706 = vld [vmem:[%s3 + $0x160] sm:$0xff]
      %v707 = vld [vmem:[%s3 + $0x168] sm:$0xff]
      %v708 = vld [vmem:[%s3 + $0x170] sm:$0xff]
      %v709 = vld [vmem:[%s3 + $0x178] sm:$0xff]
      %v710 = vld [vmem:[%s3 + $0x180] sm:$0xff]
      %v711 = vld [vmem:[%s3 + $0x188] sm:$0xff]
      %v712 = vld [vmem:[%s3 + $0x190] sm:$0xff]
      %v713 = vld [vmem:[%s3 + $0x198] sm:$0xff]
      %v714 = vld [vmem:[%s3 + $0x1a0] sm:$0xff]
      %v715 = vld [vmem:[%s3 + $0x1a8] sm:$0xff]
      %v716 = vld [vmem:[%s3 + $0x1b0] sm:$0xff]
      %v717 = vld [vmem:[%s3 + $0x1b8] sm:$0xff]
      %v718 = vld [vmem:[%s3 + $0x1c0] sm:$0xff]
      %v719 = vld [vmem:[%s3 + $0x1c8] sm:$0xff]
      %v720 = vld [vmem:[%s3 + $0x1d0] sm:$0xff]
      %v721 = vld [vmem:[%s3 + $0x1d8] sm:$0xff]
      %v722 = vld [vmem:[%s3 + $0x1e0] sm:$0xff]
      %v723 = vld [vmem:[%s3 + $0x1e8] sm:$0xff]
      %v724 = vld [vmem:[%s3 + $0x1f0] sm:$0xff]
      %v725 = vld [vmem:[%s3 + $0x1f8] sm:$0xff]
      %v726 = vld [vmem:[%s3 + $0x200] sm:$0xff]
      %v727 = vld [vmem:[%s3 + $0x208] sm:$0xff]
      %v728 = vld [vmem:[%s3 + $0x210] sm:$0xff]
      %v729 = vld [vmem:[%s3 + $0x218] sm:$0xff]
      %v730 = vld [vmem:[%s3 + $0x220] sm:$0xff]
      %v731 = vld [vmem:[%s3 + $0x228] sm:$0xff]
      %v732 = vld [vmem:[%s3 + $0x230] sm:$0xff]
      %v733 = vld [vmem:[%s3 + $0x238] sm:$0xff]
      %v734 = vld [vmem:[%s3 + $0x240] sm:$0xff]
      %v735 = vld [vmem:[%s3 + $0x248] sm:$0xff]
      %v736 = vld [vmem:[%s3 + $0x250] sm:$0xff]
      %v737 = vld [vmem:[%s3 + $0x258] sm:$0xff]
      %v738 = vld [vmem:[%s3 + $0x260] sm:$0xff]
      %v739 = vld [vmem:[%s3 + $0x268] sm:$0xff]
      %v740 = vld [vmem:[%s3 + $0x270] sm:$0xff]
      %v741 = vld [vmem:[%s3 + $0x278] sm:$0xff]
      %v742 = vld [vmem:[%s3 + $0x280] sm:$0xff]
      %v743 = vld [vmem:[%s3 + $0x288] sm:$0xff]
      %v744 = vld [vmem:[%s3 + $0x290] sm:$0xff]
      %v745 = vld [vmem:[%s3 + $0x298] sm:$0xff]
      %v746 = vld [vmem:[%s3 + $0x2a0] sm:$0xff]
      %v747 = vld [vmem:[%s3 + $0x2a8] sm:$0xff]
      %v748 = vld [vmem:[%s3 + $0x2b0] sm:$0xff]
      %v749 = vld [vmem:[%s3 + $0x2b8] sm:$0xff]
      %v750 = vld [vmem:[%s3 + $0x2c0] sm:$0xff]
      %v751 = vld [vmem:[%s3 + $0x2c8] sm:$0xff]
      %v752 = vld [vmem:[%s3 + $0x2d0] sm:$0xff]
      %v753 = vld [vmem:[%s3 + $0x2d8] sm:$0xff]
      %v754 = vld [vmem:[%s3 + $0x2e0] sm:$0xff]
      %v755 = vld [vmem:[%s3 + $0x2e8] sm:$0xff]
      %v756 = vld [vmem:[%s3 + $0x2f0] sm:$0xff]
      %v757 = vld [vmem:[%s3 + $0x2f8] sm:$0xff]
      %v758 = vld [vmem:[%s3 + $0x300] sm:$0xff]
      %v759 = vld [vmem:[%s3 + $0x308] sm:$0xff]
      %v760 = vld [vmem:[%s3 + $0x310] sm:$0xff]
      %v761 = vld [vmem:[%s3 + $0x318] sm:$0xff]
      %v762 = vld [vmem:[%s3 + $0x320] sm:$0xff]
      %v763 = vld [vmem:[%s3 + $0x328] sm:$0xff]
      %v764 = vld [vmem:[%s3 + $0x330] sm:$0xff]
      %v765 = vld [vmem:[%s3 + $0x338] sm:$0xff]
      %v766 = vld [vmem:[%s3 + $0x340] sm:$0xff]
      %v767 = vld [vmem:[%s3 + $0x348] sm:$0xff]
      %v768 = vld [vmem:[%s3 + $0x350] sm:$0xff]
      %v769 = vld [vmem:[%s3 + $0x358] sm:$0xff]
      %v770 = vld [vmem:[%s3 + $0x360] sm:$0xff]
      %v771 = vld [vmem:[%s3 + $0x368] sm:$0xff]
      %v772 = vld [vmem:[%s3 + $0x370] sm:$0xff]
      %v773 = vld [vmem:[%s3 + $0x378] sm:$0xff]
      %v774 = vld [vmem:[%s3 + $0x380] sm:$0xff]
      %v775 = vld [vmem:[%s3 + $0x388] sm:$0xff]
      %v776 = vld [vmem:[%s3 + $0x390] sm:$0xff]
      %v777 = vld [vmem:[%s3 + $0x398] sm:$0xff]
      %v778 = vld [vmem:[%s3 + $0x3a0] sm:$0xff]
      %v779 = vld [vmem:[%s3 + $0x3a8] sm:$0xff]
      %v780 = vld [vmem:[%s3 + $0x3b0] sm:$0xff]
      %v781 = vld [vmem:[%s3 + $0x3b8] sm:$0xff]
      %v782 = vld [vmem:[%s3 + $0x3c0] sm:$0xff]
      %v783 = vld [vmem:[%s3 + $0x3c8] sm:$0xff]
      %v784 = vld [vmem:[%s3 + $0x3d0] sm:$0xff]
      %v785 = vld [vmem:[%s3 + $0x3d8] sm:$0xff]
      %v786 = vld [vmem:[%s3 + $0x3e0] sm:$0xff]
      %v787 = vld [vmem:[%s3 + $0x3e8] sm:$0xff]
      %v788 = vld [vmem:[%s3 + $0x3f0] sm:$0xff]
      %v789 = vld [vmem:[%s3 + $0x3f8] sm:$0xff]
      %790 = vmatprep.subr.mxu0 %v693
      %791 = vmatpush1.msra.mxu0 %v692
      %792 = vmatprep.subr.mxu0 %v691
      %793 = vmatpush1.msra.mxu0 %v690
      %794 = vmatprep.subr.mxu0 %v689
      %795 = vmatpush1.msra.mxu0 %v688
      %796 = vmatprep.subr.mxu0 %v687
      %797 = vmatpush1.msra.mxu0 %v686
      %798 = vmatprep.subr.mxu0 %v685
      %799 = vmatpush1.msra.mxu0 %v684
      %800 = vmatprep.subr.mxu0 %v683
      %801 = vmatpush1.msra.mxu0 %v682
      %802 = vmatprep.subr.mxu0 %v681
      %803 = vmatpush1.msra.mxu0 %v680
      %804 = vmatprep.subr.mxu0 %v679
      %805 = vmatpush1.msra.mxu0 %v678
      %806 = vmatprep.subr.mxu0 %v677
      %807 = vmatpush1.msra.mxu0 %v676
      %808 = vmatprep.subr.mxu0 %v675
      %809 = vmatpush1.msra.mxu0 %v674
      %810 = vmatprep.subr.mxu0 %v673
      %811 = vmatpush1.msra.mxu0 %v672
      %812 = vmatprep.subr.mxu0 %v671
      %813 = vmatpush1.msra.mxu0 %v670
      %814 = vmatprep.subr.mxu0 %v669
      %815 = vmatpush1.msra.mxu0 %v668
      %816 = vmatprep.subr.mxu0 %v667
      %817 = vmatpush1.msra.mxu0 %v666
      %818 = vmatprep.subr.mxu0 %v665
      %819 = vmatpush1.msra.mxu0 %v664
      %820 = vmatprep.subr.mxu0 %v663
      %821 = vmatpush1.msra.mxu0 %v662
      %822 = vmatprep.subr.mxu0 %v725
      %823 = vmatpush2.msra.mxu0 %v724
      %824 = vmatprep.subr.mxu0 %v723
      %825 = vmatpush2.msra.mxu0 %v722
      %826 = vmatprep.subr.mxu0 %v721
      %827 = vmatpush2.msra.mxu0 %v720
      %828 = vmatprep.subr.mxu0 %v719
      %829 = vmatpush2.msra.mxu0 %v718
      %830 = vmatprep.subr.mxu0 %v717
      %831 = vmatpush2.msra.mxu0 %v716
      %832 = vmatprep.subr.mxu0 %v715
      %833 = vmatpush2.msra.mxu0 %v714
      %834 = vmatprep.subr.mxu0 %v713
      %835 = vmatpush2.msra.mxu0 %v712
      %836 = vmatprep.subr.mxu0 %v711
      %837 = vmatpush2.msra.mxu0 %v710
      %838 = vmatprep.subr.mxu0 %v709
      %839 = vmatpush2.msra.mxu0 %v708
      %840 = vmatprep.subr.mxu0 %v707
      %841 = vmatpush2.msra.mxu0 %v706
      %842 = vmatprep.subr.mxu0 %v705
      %843 = vmatpush2.msra.mxu0 %v704
      %844 = vmatprep.subr.mxu0 %v703
      %845 = vmatpush2.msra.mxu0 %v702
      %846 = vmatprep.subr.mxu0 %v701
      %847 = vmatpush2.msra.mxu0 %v700
      %848 = vmatprep.subr.mxu0 %v699
      %849 = vmatpush2.msra.mxu0 %v698
      %850 = vmatprep.subr.mxu0 %v697
      %851 = vmatpush2.msra.mxu0 %v696
      %852 = vmatprep.subr.mxu0 %v695
      %853 = vmatpush2.msra.mxu0 %v694
      %854 = vmatprep.mubr.f32.mxu0 %v643
      %855 = vmatmul.mubr.f32.gmra.mxu0 %v642
      %v856 = vpop.f32.mrf.mxu0
      %v857 = vadd.f32 0.0, %v856
      %v858 = vpop.f32.mrf.mxu0
      %v859 = vadd.f32 0.0, %v858
      %860 = vdwg.mxu0
      %861 = vmatprep.subr.mxu0 %v757
      %862 = vmatpush1.msra.mxu0 %v756
      %863 = vmatprep.subr.mxu0 %v755
      %864 = vmatpush1.msra.mxu0 %v754
      %865 = vmatprep.subr.mxu0 %v753
      %866 = vmatpush1.msra.mxu0 %v752
      %867 = vmatprep.subr.mxu0 %v751
      %868 = vmatpush1.msra.mxu0 %v750
      %869 = vmatprep.subr.mxu0 %v749
      %870 = vmatpush1.msra.mxu0 %v748
      %871 = vmatprep.subr.mxu0 %v747
      %872 = vmatpush1.msra.mxu0 %v746
      %873 = vmatprep.subr.mxu0 %v745
      %874 = vmatpush1.msra.mxu0 %v744
      %875 = vmatprep.subr.mxu0 %v743
      %876 = vmatpush1.msra.mxu0 %v742
      %877 = vmatprep.subr.mxu0 %v741
      %878 = vmatpush1.msra.mxu0 %v740
      %879 = vmatprep.subr.mxu0 %v739
      %880 = vmatpush1.msra.mxu0 %v738
      %881 = vmatprep.subr.mxu0 %v737
      %882 = vmatpush1.msra.mxu0 %v736
      %883 = vmatprep.subr.mxu0 %v735
      %884 = vmatpush1.msra.mxu0 %v734
      %885 = vmatprep.subr.mxu0 %v733
      %886 = vmatpush1.msra.mxu0 %v732
      %887 = vmatprep.subr.mxu0 %v731
      %888 = vmatpush1.msra.mxu0 %v730
      %889 = vmatprep.subr.mxu0 %v729
      %890 = vmatpush1.msra.mxu0 %v728
      %891 = vmatprep.subr.mxu0 %v727
      %892 = vmatpush1.msra.mxu0 %v726
      %893 = vmatprep.subr.mxu0 %v789
      %894 = vmatpush2.msra.mxu0 %v788
      %895 = vmatprep.subr.mxu0 %v787
      %896 = vmatpush2.msra.mxu0 %v786
      %897 = vmatprep.subr.mxu0 %v785
      %898 = vmatpush2.msra.mxu0 %v784
      %899 = vmatprep.subr.mxu0 %v783
      %900 = vmatpush2.msra.mxu0 %v782
      %901 = vmatprep.subr.mxu0 %v781
      %902 = vmatpush2.msra.mxu0 %v780
      %903 = vmatprep.subr.mxu0 %v779
      %904 = vmatpush2.msra.mxu0 %v778
      %905 = vmatprep.subr.mxu0 %v777
      %906 = vmatpush2.msra.mxu0 %v776
      %907 = vmatprep.subr.mxu0 %v775
      %908 = vmatpush2.msra.mxu0 %v774
      %909 = vmatprep.subr.mxu0 %v773
      %910 = vmatpush2.msra.mxu0 %v772
      %911 = vmatprep.subr.mxu0 %v771
      %912 = vmatpush2.msra.mxu0 %v770
      %913 = vmatprep.subr.mxu0 %v769
      %914 = vmatpush2.msra.mxu0 %v768
      %915 = vmatprep.subr.mxu0 %v767
      %916 = vmatpush2.msra.mxu0 %v766
      %917 = vmatprep.subr.mxu0 %v765
      %918 = vmatpush2.msra.mxu0 %v764
      %919 = vmatprep.subr.mxu0 %v763
      %920 = vmatpush2.msra.mxu0 %v762
      %921 = vmatprep.subr.mxu0 %v761
      %922 = vmatpush2.msra.mxu0 %v760
      %923 = vmatprep.subr.mxu0 %v759
      %924 = vmatpush2.msra.mxu0 %v758
      %925 = vmatprep.mubr.f32.mxu0 %v661
      %926 = vmatmul.mubr.f32.gmra.mxu0 %v652
      %v927 = vpop.f32.mrf.mxu0
      %v928 = vadd.f32 %v857, %v927
      %v929 = vpop.f32.mrf.mxu0
      %v930 = vadd.f32 %v859, %v929
      %931 = vdwg.mxu0
      %v932 = vsub.f32 0.0, %v928
      %v933 = vsub.f32 0.0, %v930
      %v934 = vmul.f32 %v932, 1.442695
      %v935 = vpow.pop %v934
      %v936 = vmul.f32 %v933, 1.442695
      %v937 = vpow.pop %v936
      %v938 = vadd.f32 %v935, 1.0
      %v939 = vadd.f32 %v937, 1.0
      %v940 = vrcp.pop %v938
      %v941 = vmul.f32 1.0, %v940
      %v942 = vrcp.pop %v939
      %v943 = vmul.f32 1.0, %v942
      %v944 = vlaneseq
      %v945 = vshrl.u32 %v944, 7
      %v946 = vsub.s32 0, %v945
      %v947 = vrot.slane %v941, %v946
      %v948 = vlaneseq
      %v949 = vshrl.u32 %v948, 7
      %v950 = vsub.s32 0, %v949
      %v951 = vrot.slane %v943, %v950
      %v952 = vmul.f32 %v616, %v947
      %v953 = vmul.f32 %v617, %v951
      %v954 = vmul.f32 %v618, %v947
      %v955 = vmul.f32 %v619, %v951
      %v956 = vmul.f32 %v620, %v947
      %v957 = vmul.f32 %v621, %v951
      %v958 = vmul.f32 %v622, %v947
      %v959 = vmul.f32 %v623, %v951
      %960 = vst [vmem:[%s197] sm:$0xff] %v952
      %961 = vst [vmem:[%s197 + $0x8] sm:$0xff] %v953
      %962 = vst [vmem:[%s197 + $0x10] sm:$0xff] %v954
      %963 = vst [vmem:[%s197 + $0x18] sm:$0xff] %v955
      %964 = vst [vmem:[%s197 + $0x20] sm:$0xff] %v956
      %965 = vst [vmem:[%s197 + $0x28] sm:$0xff] %v957
      %966 = vst [vmem:[%s197 + $0x30] sm:$0xff] %v958
      %967 = vst [vmem:[%s197 + $0x38] sm:$0xff] %v959
      %p968 = scmp.lt.s32.totalorder %s15, 1
      %s969 = scalar_select %p968, %s15, 1
      %s970 = smul.addr %s969, 8
      %s971 = smul.addr %s970, 8
      %s972 = scalar_lea.vmem %s4, %s971
      // Predicated region
      $region37: #{cbam_forward.1} parent=35 // pred_check
        %p973 = pneg %p122
      $region38: #{cbam_forward.1} parent=35 // pred_check_branch
        %975 = sbr.rel (%p973) target = $region40
      $region39: #{cbam_forward.1} parent=35 // pred_region
        _
      $region40: #{cbam_forward.1} parent=35 // pred_fallthru
        _
    $region36: #{cbam_forward.1} parent=5 // pred_fallthru
      _
    %p976 = scmp.le.s32.totalorder 2, %s10
    // Predicated region
    $region41: #{cbam_forward.1} parent=5 // pred_check
      %p977 = pneg %p976
    $region42: #{cbam_forward.1} parent=5 // pred_check_branch
      %979 = sbr.rel (%p977) target = $region44
    $region43: #{cbam_forward.1} parent=5 // pred_region
      %s980 = ssub.s32 %s10, 2
      // Predicated region
      $region45: #{cbam_forward.1} parent=43 // pred_check
        %p981 = pneg %p128
      $region46: #{cbam_forward.1} parent=43 // pred_check_branch
        %983 = sbr.rel (%p981) target = $region48
      $region47: #{cbam_forward.1} parent=43 // pred_region
        %p984 = scmp.lt.s32.totalorder %s16, 1
        %s985 = scalar_select %p984, %s16, 1
        %s986 = smul.addr %s985, 8
        %s987 = smul.addr %s986, 8
        %s988 = scalar_lea.vmem %s4, %s987
      $region48: #{cbam_forward.1} parent=43 // pred_fallthru
        _
    $region44: #{cbam_forward.1} parent=5 // pred_fallthru
      _
  $region6: #{cbam_forward.1} parent=0 // loop_footer
    %s14 = sadd.s32 1, %s10
  $region7: #{cbam_forward.1} parent=0 // loop_footer_branch
    %9 = sbr.rel target = $region3
  $region8: #{cbam_forward.1} parent=0 // loop_exit
    _

</llo_original>
